<compile_context>
chip_gen: v7x
topology: tpu7x:2x2x1
jax: 0.10.0
libtpu: 0.0.40
codegen_flags: <defaults>
</compile_context>

<pallas_src>
import numpy as np
import jax
import jax.numpy as jnp
from jax.experimental import pallas as pl
from jax.experimental.pallas import tpu as pltpu

# ----------------------------- configuration --------------------------------
NUM_QUBITS = 4
NUM_LAYERS = 2                   # ansatz = 'paper_rivera-ruiz_with_inputlayer_2'
SEQ = 8                          # seq_length
INPUT_FEATS = 3                  # data_label = 'lorenz' -> 3 features per step
FLAT = INPUT_FEATS * SEQ         # 24 : input_layer fan-in
FLAT1 = FLAT + 1                 # +1 constant column (input bias folded into matmul)
OUTPUT_SIZE = 3                  # lorenz -> Linear(num_qubits, 3)
DIM = 2 ** NUM_QUBITS            # 16
LANES = 128
PI = float(np.pi)

# constant-slab row layout; every block starts on an 8-row (sublane-tile) boundary
R_WIN = 0                        # (FLAT1, NQ)    rows   0..24
R_BIT = 32                       # (NQ, DIM)      rows  32..35
R_BIT0 = 40                      # (NQ, DIM)      rows  40..43
R_WU = 48                        # (DIM, 128)     rows  48..63
R_M2 = 64                        # (128, 128)     rows  64..191
SLAB_ROWS = 192                  # 192*128*4 B = 96 KiB resident in VMEM


# ------------------------------- Pallas kernel -------------------------------
def vqc_kernel(x_ref, slab_ref, y_ref):
    nq = NUM_QUBITS

    # ---- input layer; bias already folded (x carries a trailing 1.0 column) -
    win = slab_ref[R_WIN:R_WIN + FLAT1, 0:nq]                         # (FLAT1, nq)
    v = jnp.dot(x_ref[...], win, preferred_element_type=jnp.float32)  # (B, nq)
    # NOTE: the range reduction below assumes |v| << 2^31 (true for any sane
    # activations / trained weights); the float->int32 round is undefined for
    # astronomically large |v|.

    # ---- RY(pi*v) encoding amplitudes: cos(pi*v/2), sin(pi*v/2) -------------
    # Exact range reduction (t = v/2 reduced to [-0.5, 0.5]) + short Taylor on
    # [-pi/2, pi/2]; only mul/add/where/convert/bitwise ops (all VPU-native).
    t = 0.5 * v
    n_i = jnp.where(t >= 0.0, t + 0.5, t - 0.5).astype(jnp.int32)     # round(t)
    r = t - n_i.astype(jnp.float32)                                   # [-0.5, 0.5]
    sgn = (1 - 2 * (n_i & 1)).astype(jnp.float32)                     # (-1)^n
    u = PI * r
    u2 = u * u
    # degree-9 sin / degree-10 cos: max error < 4e-6 (tolerance is 2e-3)
    sin_u = u * (1.0 + u2 * (-1.0 / 6 + u2 * (1.0 / 120 + u2 * (-1.0 / 5040
            + u2 * (1.0 / 362880)))))
    cos_u = 1.0 + u2 * (-0.5 + u2 * (1.0 / 24 + u2 * (-1.0 / 720
            + u2 * (1.0 / 40320 + u2 * (-1.0 / 3628800)))))
    c = sgn * cos_u                                                   # cos(pi*v/2)
    s = sgn * sin_u                                                   # sin(pi*v/2)

    # ---- batched product state psi (B, DIM); real since encoding is RY-only -
    bit = slab_ref[R_BIT:R_BIT + nq, 0:DIM]                           # (nq, DIM)
    bit0 = slab_ref[R_BIT0:R_BIT0 + nq, 0:DIM]                        # 1 - bit (offline)
    factors = [c[:, i:i + 1] * bit0[i:i + 1, :] + s[:, i:i + 1] * bit[i:i + 1, :]
               for i in range(nq)]
    while len(factors) > 1:                                           # balanced tree
        factors = [factors[k] * factors[k + 1] if k + 1 < len(factors) else factors[k]
                   for k in range(0, len(factors), 2)]
    psi = factors[0]                                                  # (B, DIM)

    # ---- fixed circuit unitary: ONE lane-dense matmul -----------------------
    wu = slab_ref[R_WU:R_WU + DIM, :]                                 # (DIM, 128) = [Re(U)^T|Im(U)^T|0]
    y = jnp.dot(psi, wu, preferred_element_type=jnp.float32)          # (B, 128)
    probs2 = y * y                                                    # [re^2 | im^2 | 0]

    # ---- <Z_i>, output Linear AND its bias, all folded offline into m2 ------
    m2 = slab_ref[R_M2:R_M2 + LANES, :]                               # (128, 128)
    y_ref[...] = jnp.dot(probs2, m2, preferred_element_type=jnp.float32)


# --------------------------------- wrapper -----------------------------------
def vqc_forward(x, slab, *, batch_tile=256):
    """x: (batch, seq, input_feats) float32 -> (batch, OUTPUT_SIZE) float32."""
    B = x.shape[0]
    xf = jnp.reshape(x, (B, -1)).astype(jnp.float32)                  # torch.reshape(x,(B,-1))
    xf1 = jnp.concatenate([xf, jnp.ones((B, 1), jnp.float32)], axis=1)  # bias column

    flops = 2 * B * (FLAT1 * NUM_QUBITS + DIM * 2 * DIM + 2 * DIM * OUTPUT_SIZE)
    bytes_accessed = 4 * (B * FLAT1 + SLAB_ROWS * LANES + B * LANES)
    cost = pl.CostEstimate(flops=flops, transcendentals=0, bytes_accessed=bytes_accessed)

    if B >= batch_tile and B % batch_tile == 0:
        # Large-batch path: amortize launch/DMA overhead over many rows and shard the
        # batch axis across TensorCores on multi-core parts (v7x); no-op on v5e/v6e.
        out_pad = pl.pallas_call(
            vqc_kernel,
            out_shape=jax.ShapeDtypeStruct((B, LANES), jnp.float32),
            grid_spec=pltpu.PrefetchScalarGridSpec(
                num_scalar_prefetch=0,
                grid=(B // batch_tile,),
                in_specs=[pl.BlockSpec((batch_tile, FLAT1), lambda i: (i, 0)),
                          pl.BlockSpec((SLAB_ROWS, LANES), lambda i: (0, 0))],
                out_specs=pl.BlockSpec((batch_tile, LANES), lambda i: (i, 0))),
            compiler_params=pltpu.CompilerParams(dimension_semantics=("parallel",)),
            cost_estimate=cost,
        )(xf1, slab)
    else:
        # Small-batch path: gridless, everything resident in VMEM (~100 KiB).
        vmem = lambda: pl.BlockSpec(memory_space=pltpu.MemorySpace.VMEM)
        out_pad = pl.pallas_call(
            vqc_kernel,
            out_shape=jax.ShapeDtypeStruct((B, LANES), jnp.float32),
            in_specs=[vmem(), vmem()],
            out_specs=vmem(),
            cost_estimate=cost,
        )(xf1, slab)
    return out_pad[:, :OUTPUT_SIZE]


# ------------------------- parameter / constant setup ------------------------
def build_circuit_unitary(weights, num_qubits, num_layers):
    """Unitary of the input-independent part of the ansatz (per layer: RX/RY/RZ on
    every wire, then the CNOT ring).  Wire 0 = most-significant bit."""
    dim = 2 ** num_qubits
    I2 = np.eye(2, dtype=np.complex128)

    def embed(g, wire):
        m = np.eye(1, dtype=np.complex128)
        for w in range(num_qubits):
            m = np.kron(m, g if w == wire else I2)
        return m

    def rx(a):
        c, s = np.cos(a / 2.0), np.sin(a / 2.0)
        return np.array([[c, -1j * s], [-1j * s, c]], dtype=np.complex128)

    def ry(a):
        c, s = np.cos(a / 2.0), np.sin(a / 2.0)
        return np.array([[c, -s], [s, c]], dtype=np.complex128)

    def rz(a):
        return np.array([[np.exp(-0.5j * a), 0.0], [0.0, np.exp(0.5j * a)]],
                        dtype=np.complex128)

    def cnot(control, target):
        m = np.zeros((dim, dim), dtype=np.complex128)
        for b in range(dim):
            if (b >> (num_qubits - 1 - control)) & 1:
                bp = b ^ (1 << (num_qubits - 1 - target))
            else:
                bp = b
            m[bp, b] = 1.0
        return m

    U = np.eye(dim, dtype=np.complex128)
    for j in range(num_layers):
        for i in range(num_qubits):
            U = (embed(rz(weights[i, j, 2]), i) @ embed(ry(weights[i, j, 1]), i)
                 @ embed(rx(weights[i, j, 0]), i) @ U)
        for i in range(num_qubits - 1):
            U = cnot(i, i + 1) @ U
        U = cnot(num_qubits - 1, 0) @ U
    return U


def init_params(key):
    k_w, k_in, k_out = jax.random.split(key, 3)

    # VQC weights ~ U(0, 2*pi), shape (num_qubits, num_layers, 3)  (module's weight_init)
    w_q = np.asarray(jax.random.uniform(k_w, (NUM_QUBITS, NUM_LAYERS, 3),
                                        minval=0.0, maxval=2.0 * PI), np.float64)
    U = build_circuit_unitary(w_q, NUM_QUBITS, NUM_LAYERS)

    def linear(k, fan_in, fan_out):
        bound = 1.0 / np.sqrt(fan_in)
        kw, kb = jax.random.split(k)
        w = np.asarray(jax.random.uniform(kw, (fan_out, fan_in),
                                          minval=-bound, maxval=bound), np.float64)
        b = np.asarray(jax.random.uniform(kb, (fan_out,),
                                          minval=-bound, maxval=bound), np.float64)
        return w, b

    w_in, b_in = linear(k_in, FLAT, NUM_QUBITS)               # input_layer  (nq, 3*seq)
    w_out, b_out = linear(k_out, NUM_QUBITS, OUTPUT_SIZE)     # output_layer (3, nq)

    # basis-state bit table (wire 0 = MSB) and PauliZ sign table
    bit = np.zeros((NUM_QUBITS, DIM), np.float64)
    for i in range(NUM_QUBITS):
        for b in range(DIM):
            bit[i, b] = (b >> (NUM_QUBITS - 1 - i)) & 1
    zs = (1.0 - 2.0 * bit).T                                  # (DIM, nq)

    # --- offline algebraic folding (perf review) ---
    win_aug = np.vstack([w_in.T, b_in.reshape(1, NUM_QUBITS)])   # (FLAT1, nq): bias folded
    wu = np.hstack([U.T.real, U.T.imag])                          # (DIM, 2*DIM): fused complex matmul
    m = zs @ w_out.T                                              # (DIM, OUT): <Z> folded into Linear
    # [re^2 | im^2] @ [[m],[m]] = (re^2+im^2) @ m; and since sum(probs) = |psi|^2 = 1,
    # the output bias is folded in by adding b_out to every one of the 32 valid rows.
    m2 = np.vstack([m, m]) + b_out.reshape(1, OUTPUT_SIZE)        # (2*DIM, OUT)

    # --- pack everything into one lane-padded slab (single kernel constant) ---
    slab = np.zeros((SLAB_ROWS, LANES), np.float64)
    slab[R_WIN:R_WIN + FLAT1, 0:NUM_QUBITS] = win_aug
    slab[R_BIT:R_BIT + NUM_QUBITS, 0:DIM] = bit
    slab[R_BIT0:R_BIT0 + NUM_QUBITS, 0:DIM] = 1.0 - bit
    slab[R_WU:R_WU + DIM, 0:2 * DIM] = wu
    slab[R_M2:R_M2 + 2 * DIM, 0:OUTPUT_SIZE] = m2
    slab = jnp.asarray(slab, jnp.float32)

    ref = (w_in, b_in, w_out, b_out, U)
    return slab, ref


# --------------------------- pure numpy reference ----------------------------
def reference_forward(x, w_in, b_in, w_out, b_out, U):
    x = np.asarray(x, np.float64)
    B = x.shape[0]
    xf = x.reshape(B, -1)
    v = xf @ w_in.T + b_in                                    # (B, nq)
    ang = 0.5 * np.pi * v
    c, s = np.cos(ang), np.sin(ang)
    signs = np.stack([1 - 2 * ((np.arange(DIM) >> (NUM_QUBITS - 1 - i)) & 1)
                      for i in range(NUM_QUBITS)], axis=1)    # (DIM, nq)
    out = np.zeros((B, OUTPUT_SIZE))
    for b in range(B):
        psi = np.array([1.0 + 0j])
        for i in range(NUM_QUBITS):
            psi = np.kron(psi, np.array([c[b, i], s[b, i]]))
        psi = U @ psi
        probs = np.abs(psi) ** 2
        z = probs @ signs                                     # (nq,)
        out[b] = z @ w_out.T + b_out
    return out


# ----------------------------------- main ------------------------------------
if __name__ == "__main__":
    key = jax.random.PRNGKey(0)
    kx_small, kp, kx_big = jax.random.split(key, 3)
    slab, ref_objs = init_params(kp)

    # small-batch path (gridless, single TensorCore)
    x_small = jax.random.normal(kx_small, (8, SEQ, INPUT_FEATS), dtype=jnp.float32)
    y_small = jax.block_until_ready(vqc_forward(x_small, slab))
    np.testing.assert_allclose(np.asarray(y_small),
                               reference_forward(np.asarray(x_small), *ref_objs),
                               rtol=2e-3, atol=2e-3)

    # large-batch path (batch grid, "parallel" semantics -> both TCs on v7x)
    x_big = jax.random.normal(kx_big, (512, SEQ, INPUT_FEATS), dtype=jnp.float32)
    y_big = jax.block_until_ready(vqc_forward(x_big, slab))
    np.testing.assert_allclose(np.asarray(y_big),
                               reference_forward(np.asarray(x_big), *ref_objs),
                               rtol=2e-3, atol=2e-3)

    print("KERNEL_OK")
</pallas_src>

<mosaic_0001>
module attributes {stable_mosaic.version = 11 : i64} {
  func.func @vqc_kernel(%arg0: memref<8x25xf32, #tpu.memory_space<vmem>>, %arg1: memref<192x128xf32, #tpu.memory_space<vmem>>, %arg2: memref<8x128xf32, #tpu.memory_space<vmem>>) attributes {dimension_semantics = [], scalar_prefetch = 0 : i64, scratch_operands = 0 : i64, tpu.core_type = #tpu.core_type<tc>} {
    %c0 = arith.constant 0 : index
    %c0_0 = arith.constant 0 : index
    %0 = vector.load %arg1[%c0, %c0_0] : memref<192x128xf32, #tpu.memory_space<vmem>>, vector<25x4xf32>
    %c0_1 = arith.constant 0 : index
    %c0_2 = arith.constant 0 : index
    %1 = vector.load %arg0[%c0_1, %c0_2] : memref<8x25xf32, #tpu.memory_space<vmem>>, vector<8x25xf32>
    %cst = arith.constant dense<0.000000e+00> : vector<8x4xf32>
    %2 = tpu.matmul %1, %0, %cst {dimension_numbers = #tpu.dot_dimension_numbers<[1], [0], [0], [1], [0, 0, 1, 1], [], []>} : vector<8x25xf32>, vector<25x4xf32>, vector<8x4xf32> -> vector<8x4xf32>
    %cst_3 = arith.constant 5.000000e-01 : f32
    %3 = vector.broadcast %cst_3 : f32 to vector<8x4xf32>
    %4 = arith.mulf %3, %2 : vector<8x4xf32>
    %cst_4 = arith.constant 0.000000e+00 : f32
    %5 = vector.broadcast %cst_4 : f32 to vector<8x4xf32>
    %6 = arith.cmpf oge, %4, %5 : vector<8x4xf32>
    %cst_5 = arith.constant 5.000000e-01 : f32
    %7 = vector.broadcast %cst_5 : f32 to vector<8x4xf32>
    %8 = arith.addf %4, %7 : vector<8x4xf32>
    %cst_6 = arith.constant 5.000000e-01 : f32
    %9 = vector.broadcast %cst_6 : f32 to vector<8x4xf32>
    %10 = arith.subf %4, %9 : vector<8x4xf32>
    %11 = arith.select %6, %8, %10 : vector<8x4xi1>, vector<8x4xf32>
    %12 = arith.fptosi %11 : vector<8x4xf32> to vector<8x4xi32>
    %13 = arith.sitofp %12 : vector<8x4xi32> to vector<8x4xf32>
    %14 = arith.subf %4, %13 : vector<8x4xf32>
    %c1_i32 = arith.constant 1 : i32
    %15 = vector.broadcast %c1_i32 : i32 to vector<8x4xi32>
    %16 = arith.andi %12, %15 : vector<8x4xi32>
    %c2_i32 = arith.constant 2 : i32
    %17 = vector.broadcast %c2_i32 : i32 to vector<8x4xi32>
    %18 = arith.muli %17, %16 : vector<8x4xi32>
    %c1_i32_7 = arith.constant 1 : i32
    %19 = vector.broadcast %c1_i32_7 : i32 to vector<8x4xi32>
    %20 = arith.subi %19, %18 : vector<8x4xi32>
    %21 = arith.sitofp %20 : vector<8x4xi32> to vector<8x4xf32>
    %cst_8 = arith.constant 3.14159274 : f32
    %22 = vector.broadcast %cst_8 : f32 to vector<8x4xf32>
    %23 = arith.mulf %22, %14 : vector<8x4xf32>
    %24 = arith.mulf %23, %23 : vector<8x4xf32>
    %cst_9 = arith.constant 2.75573188E-6 : f32
    %25 = vector.broadcast %cst_9 : f32 to vector<8x4xf32>
    %26 = arith.mulf %24, %25 : vector<8x4xf32>
    %cst_10 = arith.constant -1.98412701E-4 : f32
    %27 = vector.broadcast %cst_10 : f32 to vector<8x4xf32>
    %28 = arith.addf %27, %26 : vector<8x4xf32>
    %29 = arith.mulf %24, %28 : vector<8x4xf32>
    %cst_11 = arith.constant 0.00833333377 : f32
    %30 = vector.broadcast %cst_11 : f32 to vector<8x4xf32>
    %31 = arith.addf %30, %29 : vector<8x4xf32>
    %32 = arith.mulf %24, %31 : vector<8x4xf32>
    %cst_12 = arith.constant -0.166666672 : f32
    %33 = vector.broadcast %cst_12 : f32 to vector<8x4xf32>
    %34 = arith.addf %33, %32 : vector<8x4xf32>
    %35 = arith.mulf %24, %34 : vector<8x4xf32>
    %cst_13 = arith.constant 1.000000e+00 : f32
    %36 = vector.broadcast %cst_13 : f32 to vector<8x4xf32>
    %37 = arith.addf %36, %35 : vector<8x4xf32>
    %38 = arith.mulf %23, %37 : vector<8x4xf32>
    %cst_14 = arith.constant -2.755732E-7 : f32
    %39 = vector.broadcast %cst_14 : f32 to vector<8x4xf32>
    %40 = arith.mulf %24, %39 : vector<8x4xf32>
    %cst_15 = arith.constant 2.48015876E-5 : f32
    %41 = vector.broadcast %cst_15 : f32 to vector<8x4xf32>
    %42 = arith.addf %41, %40 : vector<8x4xf32>
    %43 = arith.mulf %24, %42 : vector<8x4xf32>
    %cst_16 = arith.constant -0.00138888892 : f32
    %44 = vector.broadcast %cst_16 : f32 to vector<8x4xf32>
    %45 = arith.addf %44, %43 : vector<8x4xf32>
    %46 = arith.mulf %24, %45 : vector<8x4xf32>
    %cst_17 = arith.constant 0.0416666679 : f32
    %47 = vector.broadcast %cst_17 : f32 to vector<8x4xf32>
    %48 = arith.addf %47, %46 : vector<8x4xf32>
    %49 = arith.mulf %24, %48 : vector<8x4xf32>
    %cst_18 = arith.constant -5.000000e-01 : f32
    %50 = vector.broadcast %cst_18 : f32 to vector<8x4xf32>
    %51 = arith.addf %50, %49 : vector<8x4xf32>
    %52 = arith.mulf %24, %51 : vector<8x4xf32>
    %cst_19 = arith.constant 1.000000e+00 : f32
    %53 = vector.broadcast %cst_19 : f32 to vector<8x4xf32>
    %54 = arith.addf %53, %52 : vector<8x4xf32>
    %55 = arith.mulf %21, %54 : vector<8x4xf32>
    %56 = arith.mulf %21, %38 : vector<8x4xf32>
    %c32 = arith.constant 32 : index
    %c0_20 = arith.constant 0 : index
    %57 = vector.load %arg1[%c32, %c0_20] : memref<192x128xf32, #tpu.memory_space<vmem>>, vector<4x16xf32>
    %c40 = arith.constant 40 : index
    %c0_21 = arith.constant 0 : index
    %58 = vector.load %arg1[%c40, %c0_21] : memref<192x128xf32, #tpu.memory_space<vmem>>, vector<4x16xf32>
    %59 = vector.extract_strided_slice %55 {offsets = [0, 0], sizes = [8, 1], strides = [1, 1]} : vector<8x4xf32> to vector<8x1xf32>
    %60 = vector.extract_strided_slice %58 {offsets = [0, 0], sizes = [1, 16], strides = [1, 1]} : vector<4x16xf32> to vector<1x16xf32>
    %61 = vector.broadcast %59 : vector<8x1xf32> to vector<8x16xf32>
    %62 = vector.broadcast %60 : vector<1x16xf32> to vector<8x16xf32>
    %63 = arith.mulf %61, %62 : vector<8x16xf32>
    %64 = vector.extract_strided_slice %56 {offsets = [0, 0], sizes = [8, 1], strides = [1, 1]} : vector<8x4xf32> to vector<8x1xf32>
    %65 = vector.extract_strided_slice %57 {offsets = [0, 0], sizes = [1, 16], strides = [1, 1]} : vector<4x16xf32> to vector<1x16xf32>
    %66 = vector.broadcast %64 : vector<8x1xf32> to vector<8x16xf32>
    %67 = vector.broadcast %65 : vector<1x16xf32> to vector<8x16xf32>
    %68 = arith.mulf %66, %67 : vector<8x16xf32>
    %69 = arith.addf %63, %68 : vector<8x16xf32>
    %70 = vector.extract_strided_slice %55 {offsets = [0, 1], sizes = [8, 1], strides = [1, 1]} : vector<8x4xf32> to vector<8x1xf32>
    %71 = vector.extract_strided_slice %58 {offsets = [1, 0], sizes = [1, 16], strides = [1, 1]} : vector<4x16xf32> to vector<1x16xf32>
    %72 = vector.broadcast %70 : vector<8x1xf32> to vector<8x16xf32>
    %73 = vector.broadcast %71 : vector<1x16xf32> to vector<8x16xf32>
    %74 = arith.mulf %72, %73 : vector<8x16xf32>
    %75 = vector.extract_strided_slice %56 {offsets = [0, 1], sizes = [8, 1], strides = [1, 1]} : vector<8x4xf32> to vector<8x1xf32>
    %76 = vector.extract_strided_slice %57 {offsets = [1, 0], sizes = [1, 16], strides = [1, 1]} : vector<4x16xf32> to vector<1x16xf32>
    %77 = vector.broadcast %75 : vector<8x1xf32> to vector<8x16xf32>
    %78 = vector.broadcast %76 : vector<1x16xf32> to vector<8x16xf32>
    %79 = arith.mulf %77, %78 : vector<8x16xf32>
    %80 = arith.addf %74, %79 : vector<8x16xf32>
    %81 = vector.extract_strided_slice %55 {offsets = [0, 2], sizes = [8, 1], strides = [1, 1]} : vector<8x4xf32> to vector<8x1xf32>
    %82 = vector.extract_strided_slice %58 {offsets = [2, 0], sizes = [1, 16], strides = [1, 1]} : vector<4x16xf32> to vector<1x16xf32>
    %83 = vector.broadcast %81 : vector<8x1xf32> to vector<8x16xf32>
    %84 = vector.broadcast %82 : vector<1x16xf32> to vector<8x16xf32>
    %85 = arith.mulf %83, %84 : vector<8x16xf32>
    %86 = vector.extract_strided_slice %56 {offsets = [0, 2], sizes = [8, 1], strides = [1, 1]} : vector<8x4xf32> to vector<8x1xf32>
    %87 = vector.extract_strided_slice %57 {offsets = [2, 0], sizes = [1, 16], strides = [1, 1]} : vector<4x16xf32> to vector<1x16xf32>
    %88 = vector.broadcast %86 : vector<8x1xf32> to vector<8x16xf32>
    %89 = vector.broadcast %87 : vector<1x16xf32> to vector<8x16xf32>
    %90 = arith.mulf %88, %89 : vector<8x16xf32>
    %91 = arith.addf %85, %90 : vector<8x16xf32>
    %92 = vector.extract_strided_slice %55 {offsets = [0, 3], sizes = [8, 1], strides = [1, 1]} : vector<8x4xf32> to vector<8x1xf32>
    %93 = vector.extract_strided_slice %58 {offsets = [3, 0], sizes = [1, 16], strides = [1, 1]} : vector<4x16xf32> to vector<1x16xf32>
    %94 = vector.broadcast %92 : vector<8x1xf32> to vector<8x16xf32>
    %95 = vector.broadcast %93 : vector<1x16xf32> to vector<8x16xf32>
    %96 = arith.mulf %94, %95 : vector<8x16xf32>
    %97 = vector.extract_strided_slice %56 {offsets = [0, 3], sizes = [8, 1], strides = [1, 1]} : vector<8x4xf32> to vector<8x1xf32>
    %98 = vector.extract_strided_slice %57 {offsets = [3, 0], sizes = [1, 16], strides = [1, 1]} : vector<4x16xf32> to vector<1x16xf32>
    %99 = vector.broadcast %97 : vector<8x1xf32> to vector<8x16xf32>
    %100 = vector.broadcast %98 : vector<1x16xf32> to vector<8x16xf32>
    %101 = arith.mulf %99, %100 : vector<8x16xf32>
    %102 = arith.addf %96, %101 : vector<8x16xf32>
    %103 = arith.mulf %69, %80 : vector<8x16xf32>
    %104 = arith.mulf %91, %102 : vector<8x16xf32>
    %105 = arith.mulf %103, %104 : vector<8x16xf32>
    %c48 = arith.constant 48 : index
    %c0_22 = arith.constant 0 : index
    %106 = vector.load %arg1[%c48, %c0_22] : memref<192x128xf32, #tpu.memory_space<vmem>>, vector<16x128xf32>
    %cst_23 = arith.constant dense<0.000000e+00> : vector<8x128xf32>
    %107 = tpu.matmul %105, %106, %cst_23 {dimension_numbers = #tpu.dot_dimension_numbers<[1], [0], [0], [1], [0, 0, 1, 1], [], []>} : vector<8x16xf32>, vector<16x128xf32>, vector<8x128xf32> -> vector<8x128xf32>
    %108 = arith.mulf %107, %107 : vector<8x128xf32>
    %c64 = arith.constant 64 : index
    %c0_24 = arith.constant 0 : index
    %109 = vector.load %arg1[%c64, %c0_24] : memref<192x128xf32, #tpu.memory_space<vmem>>, vector<128x128xf32>
    %cst_25 = arith.constant dense<0.000000e+00> : vector<8x128xf32>
    %110 = tpu.matmul %108, %109, %cst_25 {dimension_numbers = #tpu.dot_dimension_numbers<[1], [0], [0], [1], [0, 0, 1, 1], [], []>} : vector<8x128xf32>, vector<128x128xf32>, vector<8x128xf32> -> vector<8x128xf32>
    %c0_26 = arith.constant 0 : index
    %c0_27 = arith.constant 0 : index
    %111 = vector.load %arg2[%c0_26, %c0_27] : memref<8x128xf32, #tpu.memory_space<vmem>>, vector<8x128xf32>
    tpu.vector_store %arg2[%c0_26, %c0_27], %110 {strides = array<i32>} : memref<8x128xf32, #tpu.memory_space<vmem>>, vector<8x128xf32>,
    return
  }
}

</mosaic_0001>

<llo_original>
// kernel: tpu_custom_call.1
$region0: #{tpu_custom_call.1}
  #allocation0 [shape = 'u32[]', space=smem, size = 0x4, offset = 0x4, fixed_abs, tag = 'smem constant byte address 0x4 - core index']
  #allocation1 [shape = 'u32[144,128]{1,0:T(1,128)}', space=vmem, size = 0x12000, scoped, tag = 'internal scratch']
  %s0 = inlined_call_operand.hbm [shape: f32[8,25], index: 0, kind: input, shape index: {}]
  %s1 = inlined_call_operand.hbm [shape: f32[192,128], index: 1, kind: input, shape index: {}]
  %s2 = inlined_call_operand.hbm [shape: f32[8,128], index: 2, kind: output, shape index: {}]
  %s3 = sld [smem:[#allocation0]]
  $region26: #{tpu_custom_call.1} parent=0
    _
  %s5 = ssub.s32 1, %s3
  %s6 = scalar_select 0, %s5, %s3
  $region1: #{tpu_custom_call.1} parent=0
    #allocation2 [shape = 'u8[4096]{0}', space=vmem, size = 0x1000, scoped, tag = 'input window, operand 0, single buffered']
    #allocation3 [shape = 's32[1]{0}', space=sflag, size = 0x4, scoped, tag = 'scoped memory for tpu_custom_call.1']
    #allocation4 [shape = 's32[1]{0}', space=sflag, size = 0x4, scoped, tag = 'scoped memory for tpu_custom_call.1']
    #allocation5 [shape = 'u8[98304]{0}', space=vmem, size = 0x18000, scoped, tag = 'input window, operand 1, single buffered']
    #allocation6 [shape = 's32[1]{0}', space=sflag, size = 0x4, scoped, tag = 'scoped memory for tpu_custom_call.1']
    #allocation7 [shape = 'u8[4096]{0}', space=vmem, size = 0x1000, scoped, tag = 'output window, operand 0, single buffered']
    %7 = vsyncpa [#allocation3], 0
    %8 = vsyncpa [#allocation6], 0
    %9 = vsyncpa [#allocation4], 0
    // Predicated region
    $region2: #{tpu_custom_call.1} parent=1 // pred_check
      _
    $region3: #{tpu_custom_call.1} parent=1 // pred_check_branch
      %11 = sbr.rel (0) target = $region5
    $region4: #{tpu_custom_call.1} parent=1 // pred_region
      %s13 = ssub.s32 128, 128
      %14 = vsyncadd [#allocation3], %s13
      %s16 = sshll.u32 [#allocation2], 4
      %s17 = int_to_ptr.vmem [resolvable:$true] %s16
      %19 = dma.hbm_to_vmem [thread:$0]  %s0, 128, %s17, [#allocation3]
    $region5: #{tpu_custom_call.1} parent=1 // pred_fallthru
      _
    // Predicated region
    $region6: #{tpu_custom_call.1} parent=1 // pred_check
      _
    $region7: #{tpu_custom_call.1} parent=1 // pred_check_branch
      %21 = sbr.rel (0) target = $region9
    $region8: #{tpu_custom_call.1} parent=1 // pred_region
      %s23 = ssub.s32 3072, 3072
      %24 = vsyncadd [#allocation6], %s23
      %s25 = sshll.u32 [#allocation5], 4
      %s26 = int_to_ptr.vmem [resolvable:$true] %s25
      %31 = dma.hbm_to_vmem [thread:$0]  %s1, 3072, %s26, [#allocation6], 128, 128, 8
    $region9: #{tpu_custom_call.1} parent=1 // pred_fallthru
      _
    // Predicated region
    $region10: #{tpu_custom_call.1} parent=1 // pred_check
      _
    $region11: #{tpu_custom_call.1} parent=1 // pred_check_branch
      %33 = sbr.rel (0) target = $region13
    $region12: #{tpu_custom_call.1} parent=1 // pred_region
      %34 = dma.done [#allocation3], 128
    $region13: #{tpu_custom_call.1} parent=1 // pred_fallthru
      _
    // Predicated region
    $region14: #{tpu_custom_call.1} parent=1 // pred_check
      _
    $region15: #{tpu_custom_call.1} parent=1 // pred_check_branch
      %36 = sbr.rel (0) target = $region17
    $region16: #{tpu_custom_call.1} parent=1 // pred_region
      %37 = dma.done [#allocation6], 3072
    $region17: #{tpu_custom_call.1} parent=1 // pred_fallthru
      _
    %v38 = vld [vmem:[#allocation5] sm:$0xff]
    %v39 = vld [vmem:[#allocation5 + $0x8] sm:$0xff]
    %v40 = vld [vmem:[#allocation5 + $0x10] sm:$0xff]
    %v41 = vld [vmem:[#allocation5 + $0x18] sm:$0x1]
    %v42 = vld [vmem:[#allocation2] sm:$0xff]
    %vm43 = vcmask 203776
    %v45 = vsel %vm43, %v42, 0
    %vm47 = vcmask 1040384
    %v49 = vsel %vm47, %v41, 0
    %51 = vmatprep.subr.mxu0 0.0
    %52 = vmatpush1.msra.mxu0 %v38
    %53 = vmatprep.subr.mxu0 0.0
    %54 = vmatpush1.msra.mxu0 %v39
    %55 = vmatprep.subr.mxu0 0.0
    %56 = vmatpush1.msra.mxu0 %v40
    %57 = vmatprep.subr.mxu0 0.0
    %58 = vmatpush1.msra.mxu0 %v49
    %59 = vmatprep.subr.mxu0 0.0
    %60 = vmatpush1.msra.mxu0 0.0
    %61 = vmatprep.subr.mxu0 0.0
    %62 = vmatpush1.msra.mxu0 0.0
    %63 = vmatprep.subr.mxu0 0.0
    %64 = vmatpush1.msra.mxu0 0.0
    %65 = vmatprep.subr.mxu0 0.0
    %66 = vmatpush1.msra.mxu0 0.0
    %67 = vmatprep.subr.mxu0 0.0
    %68 = vmatpush1.msra.mxu0 0.0
    %69 = vmatprep.subr.mxu0 0.0
    %70 = vmatpush1.msra.mxu0 0.0
    %71 = vmatprep.subr.mxu0 0.0
    %72 = vmatpush1.msra.mxu0 0.0
    %73 = vmatprep.subr.mxu0 0.0
    %74 = vmatpush1.msra.mxu0 0.0
    %75 = vmatprep.subr.mxu0 0.0
    %76 = vmatpush1.msra.mxu0 0.0
    %77 = vmatprep.subr.mxu0 0.0
    %78 = vmatpush1.msra.mxu0 0.0
    %79 = vmatprep.subr.mxu0 0.0
    %80 = vmatpush1.msra.mxu0 0.0
    %81 = vmatprep.subr.mxu0 0.0
    %82 = vmatpush1.msra.mxu0 0.0
    %83 = vmatprep.subr.mxu0 0.0
    %84 = vmatpush1.msra.mxu0 0.0
    %85 = vmatprep.subr.mxu0 0.0
    %86 = vmatpush1.msra.mxu0 0.0
    %87 = vmatprep.subr.mxu0 0.0
    %88 = vmatpush1.msra.mxu0 0.0
    %89 = vmatprep.subr.mxu0 0.0
    %90 = vmatpush1.msra.mxu0 0.0
    %91 = vmatprep.subr.mxu0 0.0
    %92 = vmatpush1.msra.mxu0 0.0
    %93 = vmatprep.subr.mxu0 0.0
    %94 = vmatpush1.msra.mxu0 0.0
    %95 = vmatprep.subr.mxu0 0.0
    %96 = vmatpush1.msra.mxu0 0.0
    %97 = vmatprep.subr.mxu0 0.0
    %98 = vmatpush1.msra.mxu0 0.0
    %99 = vmatprep.subr.mxu0 0.0
    %100 = vmatpush1.msra.mxu0 0.0
    %101 = vmatprep.subr.mxu0 0.0
    %102 = vmatpush1.msra.mxu0 0.0
    %103 = vmatprep.subr.mxu0 0.0
    %104 = vmatpush1.msra.mxu0 0.0
    %105 = vmatprep.subr.mxu0 0.0
    %106 = vmatpush1.msra.mxu0 0.0
    %107 = vmatprep.subr.mxu0 0.0
    %108 = vmatpush1.msra.mxu0 0.0
    %109 = vmatprep.subr.mxu0 0.0
    %110 = vmatpush1.msra.mxu0 0.0
    %111 = vmatprep.subr.mxu0 0.0
    %112 = vmatpush1.msra.mxu0 0.0
    %113 = vmatprep.subr.mxu0 0.0
    %114 = vmatpush1.msra.mxu0 0.0
    %115 = vmatprep.mubr.f32.mxu0 0.0
    %116 = vmatmul.mubr.f32.gmra.mrb[0].mxu0 %v45
    %v117 = vpop.f32.mrb[0].mxu0
    %v118 = vadd.f32 0.0, %v117
    %v119 = vpop.f32.mrb[0].mxu0
    %120 = vdwg.mxu0
    %v121 = vmul.f32 %v118, 0.5
    %vm122 = vcmp.ge.f32.partialorder %v121, 0.0
    %v123 = vadd.f32 %v121, 0.5
    %v124 = vsub.f32 %v121, 0.5
    %v125 = vsel %vm122, %v123, %v124
    %v126 = vcvt.f32.s32.to.zero.pseudo %v125
    %v127 = vcvt.s32.f32 %v126
    %v128 = vsub.f32 %v121, %v127
    %v129 = vand.u32 %v126, 1
    %v130 = vmul.u32 %v129, 2
    %v131 = vsub.s32 1, %v130
    %v132 = vcvt.s32.f32 %v131
    %v133 = vmul.f32 %v128, 3.1415927
    %v134 = vmul.f32 %v133, %v133
    %v135 = vmul.f32 %v134, 2.7557319e-06
    %v136 = vadd.f32 %v135, -0.0001984127
    %v137 = vmul.f32 %v134, %v136
    %v138 = vadd.f32 %v137, 0.008333334
    %v139 = vmul.f32 %v134, %v138
    %v140 = vadd.f32 %v139, -0.16666667
    %v141 = vmul.f32 %v134, %v140
    %v142 = vadd.f32 %v141, 1.0
    %v143 = vmul.f32 %v133, %v142
    %v144 = vmul.f32 %v134, -2.755732e-07
    %v145 = vadd.f32 %v144, 2.4801588e-05
    %v146 = vmul.f32 %v134, %v145
    %v147 = vadd.f32 %v146, -0.0013888889
    %v148 = vmul.f32 %v134, %v147
    %v149 = vadd.f32 %v148, 0.041666668
    %v150 = vmul.f32 %v134, %v149
    %v151 = vadd.f32 %v150, -0.5
    %v152 = vmul.f32 %v134, %v151
    %v153 = vadd.f32 %v152, 1.0
    %v154 = vmul.f32 %v132, %v153
    %v155 = vmul.f32 %v132, %v143
    %v156 = vld [vmem:[#allocation5 + $0x20] sm:$0xf]
    %v157 = vld [vmem:[#allocation5 + $0x28] sm:$0xf]
    %159 = vset.pattern.permute.xlu0 0
    %160 = vperm.xlu0 %159, %v154
    %v161 = vpop.permute.xlu0 %160
    %v163 = vlaneseq
    %v164 = vshrl.u32 %v163, 7
    %v165 = vsub.s32 0, %v164
    %v166 = vrot.slane %v157, %v165
    %v167 = vmul.f32 %v161, %v166
    %169 = vset.pattern.permute.xlu0 0
    %170 = vperm.xlu0 %169, %v155
    %v171 = vpop.permute.xlu0 %170
    %v173 = vlaneseq
    %v174 = vshrl.u32 %v173, 7
    %v175 = vsub.s32 0, %v174
    %v176 = vrot.slane %v156, %v175
    %v177 = vmul.f32 %v171, %v176
    %v178 = vadd.f32 %v167, %v177
    %179 = vset.pattern.permute.xlu0 1
    %180 = vperm.xlu0 %179, %v154
    %v181 = vpop.permute.xlu0 %180
    %v183 = vlaneseq
    %v184 = vshrl.u32 %v183, 7
    %v185 = vsub.s32 1, %v184
    %v186 = vrot.slane %v157, %v185
    %v187 = vmul.f32 %v181, %v186
    %188 = vset.pattern.permute.xlu0 1
    %189 = vperm.xlu0 %188, %v155
    %v190 = vpop.permute.xlu0 %189
    %v192 = vlaneseq
    %v193 = vshrl.u32 %v192, 7
    %v194 = vsub.s32 1, %v193
    %v195 = vrot.slane %v156, %v194
    %v196 = vmul.f32 %v190, %v195
    %v197 = vadd.f32 %v187, %v196
    %198 = vset.pattern.permute.xlu0 2
    %199 = vperm.xlu0 %198, %v154
    %v200 = vpop.permute.xlu0 %199
    %v202 = vlaneseq
    %v203 = vshrl.u32 %v202, 7
    %v204 = vsub.s32 2, %v203
    %v205 = vrot.slane %v157, %v204
    %v206 = vmul.f32 %v200, %v205
    %207 = vset.pattern.permute.xlu0 2
    %208 = vperm.xlu0 %207, %v155
    %v209 = vpop.permute.xlu0 %208
    %v211 = vlaneseq
    %v212 = vshrl.u32 %v211, 7
    %v213 = vsub.s32 2, %v212
    %v214 = vrot.slane %v156, %v213
    %v215 = vmul.f32 %v209, %v214
    %v216 = vadd.f32 %v206, %v215
    %217 = vset.pattern.permute.xlu0 3
    %218 = vperm.xlu0 %217, %v154
    %v219 = vpop.permute.xlu0 %218
    %v221 = vlaneseq
    %v222 = vshrl.u32 %v221, 7
    %v223 = vsub.s32 3, %v222
    %v224 = vrot.slane %v157, %v223
    %v225 = vmul.f32 %v219, %v224
    %226 = vset.pattern.permute.xlu0 3
    %227 = vperm.xlu0 %226, %v155
    %v228 = vpop.permute.xlu0 %227
    %v230 = vlaneseq
    %v231 = vshrl.u32 %v230, 7
    %v232 = vsub.s32 3, %v231
    %v233 = vrot.slane %v156, %v232
    %v234 = vmul.f32 %v228, %v233
    %v235 = vadd.f32 %v225, %v234
    %v236 = vmul.f32 %v178, %v197
    %v237 = vmul.f32 %v216, %v235
    %v238 = vmul.f32 %v236, %v237
    %v239 = vld [vmem:[#allocation5 + $0x30] sm:$0xff]
    %v240 = vld [vmem:[#allocation5 + $0x38] sm:$0xff]
    %vm241 = vcmask 130048
    %v243 = vsel %vm241, %v238, 0
    %245 = vmatprep.subr.mxu0 0.0
    %246 = vmatpush1.msra.mxu0 %v239
    %247 = vmatprep.subr.mxu0 0.0
    %248 = vmatpush1.msra.mxu0 %v240
    %249 = vmatprep.subr.mxu0 0.0
    %250 = vmatpush1.msra.mxu0 0.0
    %251 = vmatprep.subr.mxu0 0.0
    %252 = vmatpush1.msra.mxu0 0.0
    %253 = vmatprep.subr.mxu0 0.0
    %254 = vmatpush1.msra.mxu0 0.0
    %255 = vmatprep.subr.mxu0 0.0
    %256 = vmatpush1.msra.mxu0 0.0
    %257 = vmatprep.subr.mxu0 0.0
    %258 = vmatpush1.msra.mxu0 0.0
    %259 = vmatprep.subr.mxu0 0.0
    %260 = vmatpush1.msra.mxu0 0.0
    %261 = vmatprep.subr.mxu0 0.0
    %262 = vmatpush1.msra.mxu0 0.0
    %263 = vmatprep.subr.mxu0 0.0
    %264 = vmatpush1.msra.mxu0 0.0
    %265 = vmatprep.subr.mxu0 0.0
    %266 = vmatpush1.msra.mxu0 0.0
    %267 = vmatprep.subr.mxu0 0.0
    %268 = vmatpush1.msra.mxu0 0.0
    %269 = vmatprep.subr.mxu0 0.0
    %270 = vmatpush1.msra.mxu0 0.0
    %271 = vmatprep.subr.mxu0 0.0
    %272 = vmatpush1.msra.mxu0 0.0
    %273 = vmatprep.subr.mxu0 0.0
    %274 = vmatpush1.msra.mxu0 0.0
    %275 = vmatprep.subr.mxu0 0.0
    %276 = vmatpush1.msra.mxu0 0.0
    %277 = vmatprep.subr.mxu0 0.0
    %278 = vmatpush1.msra.mxu0 0.0
    %279 = vmatprep.subr.mxu0 0.0
    %280 = vmatpush1.msra.mxu0 0.0
    %281 = vmatprep.subr.mxu0 0.0
    %282 = vmatpush1.msra.mxu0 0.0
    %283 = vmatprep.subr.mxu0 0.0
    %284 = vmatpush1.msra.mxu0 0.0
    %285 = vmatprep.subr.mxu0 0.0
    %286 = vmatpush1.msra.mxu0 0.0
    %287 = vmatprep.subr.mxu0 0.0
    %288 = vmatpush1.msra.mxu0 0.0
    %289 = vmatprep.subr.mxu0 0.0
    %290 = vmatpush1.msra.mxu0 0.0
    %291 = vmatprep.subr.mxu0 0.0
    %292 = vmatpush1.msra.mxu0 0.0
    %293 = vmatprep.subr.mxu0 0.0
    %294 = vmatpush1.msra.mxu0 0.0
    %295 = vmatprep.subr.mxu0 0.0
    %296 = vmatpush1.msra.mxu0 0.0
    %297 = vmatprep.subr.mxu0 0.0
    %298 = vmatpush1.msra.mxu0 0.0
    %299 = vmatprep.subr.mxu0 0.0
    %300 = vmatpush1.msra.mxu0 0.0
    %301 = vmatprep.subr.mxu0 0.0
    %302 = vmatpush1.msra.mxu0 0.0
    %303 = vmatprep.subr.mxu0 0.0
    %304 = vmatpush1.msra.mxu0 0.0
    %305 = vmatprep.subr.mxu0 0.0
    %306 = vmatpush1.msra.mxu0 0.0
    %307 = vmatprep.subr.mxu0 0.0
    %308 = vmatpush1.msra.mxu0 0.0
    %309 = vmatprep.mubr.f32.mxu0 0.0
    %310 = vmatmul.mubr.f32.gmra.mrb[0].mxu0 %v243
    %v311 = vpop.f32.mrb[0].mxu0
    %v312 = vadd.f32 0.0, %v311
    %v313 = vpop.f32.mrb[0].mxu0
    %314 = vdwg.mxu0
    %v315 = vmul.f32 %v312, %v312
    %v316 = vld [vmem:[#allocation5 + $0x40] sm:$0xff]
    %v317 = vld [vmem:[#allocation5 + $0x48] sm:$0xff]
    %v318 = vld [vmem:[#allocation5 + $0x50] sm:$0xff]
    %v319 = vld [vmem:[#allocation5 + $0x58] sm:$0xff]
    %v320 = vld [vmem:[#allocation5 + $0x60] sm:$0xff]
    %v321 = vld [vmem:[#allocation5 + $0x68] sm:$0xff]
    %v322 = vld [vmem:[#allocation5 + $0x70] sm:$0xff]
    %v323 = vld [vmem:[#allocation5 + $0x78] sm:$0xff]
    %v324 = vld [vmem:[#allocation5 + $0x80] sm:$0xff]
    %v325 = vld [vmem:[#allocation5 + $0x88] sm:$0xff]
    %v326 = vld [vmem:[#allocation5 + $0x90] sm:$0xff]
    %v327 = vld [vmem:[#allocation5 + $0x98] sm:$0xff]
    %v328 = vld [vmem:[#allocation5 + $0xa0] sm:$0xff]
    %v329 = vld [vmem:[#allocation5 + $0xa8] sm:$0xff]
    %v330 = vld [vmem:[#allocation5 + $0xb0] sm:$0xff]
    %v331 = vld [vmem:[#allocation5 + $0xb8] sm:$0xff]
    %332 = vmatprep.subr.mxu0 0.0
    %333 = vmatpush1.msra.mxu0 %v316
    %334 = vmatprep.subr.mxu0 0.0
    %335 = vmatpush1.msra.mxu0 %v317
    %336 = vmatprep.subr.mxu0 0.0
    %337 = vmatpush1.msra.mxu0 %v318
    %338 = vmatprep.subr.mxu0 0.0
    %339 = vmatpush1.msra.mxu0 %v319
    %340 = vmatprep.subr.mxu0 0.0
    %341 = vmatpush1.msra.mxu0 %v320
    %342 = vmatprep.subr.mxu0 0.0
    %343 = vmatpush1.msra.mxu0 %v321
    %344 = vmatprep.subr.mxu0 0.0
    %345 = vmatpush1.msra.mxu0 %v322
    %346 = vmatprep.subr.mxu0 0.0
    %347 = vmatpush1.msra.mxu0 %v323
    %348 = vmatprep.subr.mxu0 0.0
    %349 = vmatpush1.msra.mxu0 %v324
    %350 = vmatprep.subr.mxu0 0.0
    %351 = vmatpush1.msra.mxu0 %v325
    %352 = vmatprep.subr.mxu0 0.0
    %353 = vmatpush1.msra.mxu0 %v326
    %354 = vmatprep.subr.mxu0 0.0
    %355 = vmatpush1.msra.mxu0 %v327
    %356 = vmatprep.subr.mxu0 0.0
    %357 = vmatpush1.msra.mxu0 %v328
    %358 = vmatprep.subr.mxu0 0.0
    %359 = vmatpush1.msra.mxu0 %v329
    %360 = vmatprep.subr.mxu0 0.0
    %361 = vmatpush1.msra.mxu0 %v330
    %362 = vmatprep.subr.mxu0 0.0
    %363 = vmatpush1.msra.mxu0 %v331
    %364 = vmatprep.subr.mxu0 0.0
    %365 = vmatpush1.msra.mxu0 0.0
    %366 = vmatprep.subr.mxu0 0.0
    %367 = vmatpush1.msra.mxu0 0.0
    %368 = vmatprep.subr.mxu0 0.0
    %369 = vmatpush1.msra.mxu0 0.0
    %370 = vmatprep.subr.mxu0 0.0
    %371 = vmatpush1.msra.mxu0 0.0
    %372 = vmatprep.subr.mxu0 0.0
    %373 = vmatpush1.msra.mxu0 0.0
    %374 = vmatprep.subr.mxu0 0.0
    %375 = vmatpush1.msra.mxu0 0.0
    %376 = vmatprep.subr.mxu0 0.0
    %377 = vmatpush1.msra.mxu0 0.0
    %378 = vmatprep.subr.mxu0 0.0
    %379 = vmatpush1.msra.mxu0 0.0
    %380 = vmatprep.subr.mxu0 0.0
    %381 = vmatpush1.msra.mxu0 0.0
    %382 = vmatprep.subr.mxu0 0.0
    %383 = vmatpush1.msra.mxu0 0.0
    %384 = vmatprep.subr.mxu0 0.0
    %385 = vmatpush1.msra.mxu0 0.0
    %386 = vmatprep.subr.mxu0 0.0
    %387 = vmatpush1.msra.mxu0 0.0
    %388 = vmatprep.subr.mxu0 0.0
    %389 = vmatpush1.msra.mxu0 0.0
    %390 = vmatprep.subr.mxu0 0.0
    %391 = vmatpush1.msra.mxu0 0.0
    %392 = vmatprep.subr.mxu0 0.0
    %393 = vmatpush1.msra.mxu0 0.0
    %394 = vmatprep.subr.mxu0 0.0
    %395 = vmatpush1.msra.mxu0 0.0
    %396 = vmatprep.mubr.f32.mxu0 0.0
    %397 = vmatmul.mubr.f32.gmra.mrb[0].mxu0 %v315
    %v398 = vpop.f32.mrb[0].mxu0
    %v399 = vadd.f32 0.0, %v398
    %v400 = vpop.f32.mrb[0].mxu0
    %401 = vdwg.mxu0
    %402 = vst [vmem:[#allocation7] sm:$0xff] %v399
    // Predicated region
    $region18: #{tpu_custom_call.1} parent=1 // pred_check
      _
    $region19: #{tpu_custom_call.1} parent=1 // pred_check_branch
      %404 = sbr.rel (0) target = $region21
    $region20: #{tpu_custom_call.1} parent=1 // pred_region
      %s406 = ssub.s32 128, 128
      %407 = vsyncadd [#allocation4], %s406
      %s409 = sshll.u32 [#allocation7], 4
      %s410 = int_to_ptr.vmem [resolvable:$true] %s409
      %412 = dma.vmem_to_hbm [thread:$0]  %s410, 128, %s2, [#allocation4]
    $region21: #{tpu_custom_call.1} parent=1 // pred_fallthru
      _
    // Predicated region
    $region22: #{tpu_custom_call.1} parent=1 // pred_check
      _
    $region23: #{tpu_custom_call.1} parent=1 // pred_check_branch
      %414 = sbr.rel (0) target = $region25
    $region24: #{tpu_custom_call.1} parent=1 // pred_region
      %415 = dma.done [#allocation4], 128
    $region25: #{tpu_custom_call.1} parent=1 // pred_fallthru
      _
    %416 = vsyncpa [#allocation3], 1
    %417 = vsyncpa [#allocation6], 1
    %418 = vsyncpa [#allocation4], 1

</llo_original>
